<compile_context>
chip_gen: v7x
topology: tpu7x:2x2x1
jax: 0.10.0
libtpu: 0.0.40
codegen_flags: <defaults>
</compile_context>

<pallas_src>
import math

import jax
import jax.numpy as jnp
from jax.experimental import pallas as pl
from jax.experimental.pallas import tpu as pltpu


def _cdiv(x, y):
    return -(-x // y)


def _vmem_capacity_bytes():
    """Physical VMEM of the current chip (fallback: v7x's 64 MiB)."""
    try:
        info = pltpu.get_tpu_info()
        cap = getattr(info, "vmem_capacity_bytes", None)
        if cap:
            return int(cap)
    except Exception:
        pass
    return 64 * 1024 * 1024


def self_attention_layer(h, a, b):
    """Pallas forward of SelfAttentionLayer.

    h: (N, dim), a: (dim, da), b: (da, 1)  ->  (dim,) in h.dtype
    """
    N, dim = h.shape
    da = a.shape[1]
    out_dtype = h.dtype

    itemsize = jnp.dtype(h.dtype).itemsize
    row_bytes = dim * itemsize

    # ---- generation-aware VMEM budget / tile sizing -------------------------
    vmem_cap = _vmem_capacity_bytes()             # 128 MiB (v5e/v6e) / 64 MiB (v7x)
    vmem_budget = min(vmem_cap // 2, 64 << 20)    # headroom under physical VMEM
    # h tiles are double-buffered by the pipeline; reserve a few MiB for
    # a / b / outputs / internal scratch.
    h_tile_budget = max((vmem_budget - (4 << 20)) // 2, 1 << 20)

    ROW_CAP = 8192                                # multi-MiB tiles for typical dims
    max_rows = max(8, h_tile_budget // row_bytes)

    if N <= min(max_rows, ROW_CAP):
        tile_n = N                                # single full-extent tile
    else:
        tile_n = min(max_rows, ROW_CAP)
        tile_n = max(8, (tile_n // 8) * 8)

    n_tiles = _cdiv(N, tile_n)
    # Two chunks on a leading "parallel" axis -> both TensorCores on v7x.
    n_chunks = 2 if (n_tiles >= 4 and n_tiles % 2 == 0) else 1
    steps = n_tiles // n_chunks
    rem = (N % tile_n) != 0

    b_row = jnp.reshape(b, (1, da))               # lane-dense row of b

    def kernel(h_ref, a_ref, b_ref, m_ref, l_ref, acc_ref):
        c = pl.program_id(0)
        s = pl.program_id(1)

        @pl.when(s == 0)
        def _init():
            m_ref[...] = jnp.full((1, 1, 1), -jnp.inf, jnp.float32)
            l_ref[...] = jnp.zeros((1, 1, 1), jnp.float32)
            acc_ref[...] = jnp.zeros((1, 1, dim), jnp.float32)

        h_t = h_ref[...]                          # (tile_n, dim), native dtype (MXU feed)

        valid = None
        if rem:  # only the boundary tile can contain out-of-range rows
            base = (c * steps + s) * tile_n
            row = base + jax.lax.broadcasted_iota(jnp.int32, (tile_n, 1), 0)
            valid = row < N
            h_t = jnp.where(valid, h_t, jnp.zeros_like(h_t))   # NaN-safe garbage rows

        t = jnp.tanh(jnp.dot(h_t, a_ref[...],
                             preferred_element_type=jnp.float32))       # (tile_n, da) f32
        # e = tanh(h@a) @ b as a VPU multiply + lane reduce (no 1-lane MXU matmul)
        e = jnp.sum(t * b_ref[...].astype(jnp.float32),
                    axis=-1, keepdims=True)                             # (tile_n, 1)
        if rem:
            e = jnp.where(valid, e, -jnp.inf)     # masked rows get zero softmax weight

        # Online softmax update; running stats live in the chunk-resident outputs.
        m_prev = m_ref[0]                                                # (1, 1)
        m_new = jnp.maximum(m_prev, jnp.max(e, axis=0, keepdims=True))
        alpha = jnp.exp(m_prev - m_new)
        p = jnp.exp(e - m_new)                                           # (tile_n, 1) f32

        l_ref[0] = alpha * l_ref[0] + jnp.sum(p, axis=0, keepdims=True)

        if h_t.dtype == jnp.float32:
            prod = p * h_t
        elif jnp.issubdtype(h_t.dtype, jnp.floating):
            # bf16/f16: multiply in native dtype (v6e/v7x VPU), accumulate in f32.
            prod = (p.astype(h_t.dtype) * h_t).astype(jnp.float32)
        else:
            prod = p * h_t.astype(jnp.float32)
        acc_ref[0] = alpha * acc_ref[0] + jnp.sum(prod, axis=0, keepdims=True)
        m_ref[0] = m_new

    cost = pl.CostEstimate(
        flops=int(2 * N * dim * da + 2 * N * da + 4 * N * dim),
        transcendentals=int(N * da + 2 * N),                 # tanh + exp
        bytes_accessed=int(h.size * itemsize
                           + a.size * jnp.dtype(a.dtype).itemsize
                           + b.size * jnp.dtype(b.dtype).itemsize
                           + n_chunks * (dim + 2) * 4),
    )

    m_part, l_part, acc_part = pl.pallas_call(
        kernel,
        out_shape=(
            jax.ShapeDtypeStruct((n_chunks, 1, 1), jnp.float32),    # running max
            jax.ShapeDtypeStruct((n_chunks, 1, 1), jnp.float32),    # running sum
            jax.ShapeDtypeStruct((n_chunks, 1, dim), jnp.float32),  # weighted-sum acc
        ),
        grid_spec=pltpu.PrefetchScalarGridSpec(
            num_scalar_prefetch=0,
            grid=(n_chunks, steps),
            in_specs=[
                # h: tiled over N, lane dim full-extent (no padded copy needed)
                pl.BlockSpec((tile_n, dim), lambda c, s: (c * steps + s, 0)),
                pl.BlockSpec((dim, da), lambda c, s: (0, 0)),       # a: resident
                pl.BlockSpec((1, da), lambda c, s: (0, 0)),         # b: resident row
            ],
            out_specs=[
                pl.BlockSpec((1, 1, 1), lambda c, s: (c, 0, 0)),
                pl.BlockSpec((1, 1, 1), lambda c, s: (c, 0, 0)),
                pl.BlockSpec((1, 1, dim), lambda c, s: (c, 0, 0)),
            ],
        ),
        compiler_params=pltpu.CompilerParams(
            dimension_semantics=("parallel", "arbitrary"),
            vmem_limit_bytes=int(vmem_budget),
        ),
        cost_estimate=cost,
    )(h, a, b_row)

    # Tiny exact epilogue: merge per-chunk (m, l, acc) partials and divide once.
    m = m_part[:, 0, 0]                           # (C,)
    l = l_part[:, 0, 0]                           # (C,)
    acc = acc_part[:, 0, :]                       # (C, dim)
    m_g = jnp.max(m)
    w = jnp.exp(m - m_g)                          # (C,)
    num = jnp.sum(w[:, None] * acc, axis=0)       # (dim,)
    den = jnp.sum(w * l)
    return (num / den).astype(out_dtype)          # (dim,)


def _xavier_uniform(key, shape, gain):
    # torch.nn.init.xavier_uniform_: U(-bound, bound), bound = gain*sqrt(6/(fan_in+fan_out))
    fan_in, fan_out = shape[0], shape[1]
    bound = gain * math.sqrt(6.0 / (fan_in + fan_out))
    return jax.random.uniform(key, shape, dtype=jnp.float32, minval=-bound, maxval=bound)


def _reference(h, a, b):
    e = jnp.tanh(h @ a) @ b                       # (N, 1)
    attn = jax.nn.softmax(e[:, 0])                # (N,)
    return attn @ h                               # (dim,)


if __name__ == "__main__":
    # Small shapes consistent with the module: N entities, hidden dim, attention da.
    N, dim, da = 8, 32, 16

    key = jax.random.PRNGKey(0)
    k_h, k_a, k_b = jax.random.split(key, 3)

    h = jax.random.normal(k_h, (N, dim), dtype=jnp.float32)
    a = _xavier_uniform(k_a, (dim, da), gain=1.414)
    b = _xavier_uniform(k_b, (da, 1), gain=1.414)

    out = self_attention_layer(h, a, b)
    jax.block_until_ready(out)

    ref = _reference(h, a, b)
    assert out.shape == (dim,)
    # Exact division in the epilogue -> tight tolerance vs the pure-JAX reference.
    assert jnp.allclose(out, ref, atol=1e-5, rtol=1e-5), "mismatch vs reference"

    print("KERNEL_OK")
</pallas_src>

<mosaic_0001>
module attributes {stable_mosaic.version = 11 : i64} {
  func.func @kernel(%arg0: i32, %arg1: i32, %arg2: memref<8x32xf32, #tpu.memory_space<vmem>>, %arg3: memref<32x16xf32, #tpu.memory_space<vmem>>, %arg4: memref<1x16xf32, #tpu.memory_space<vmem>>, %arg5: memref<1x1x1xf32, #tpu.memory_space<vmem>>, %arg6: memref<1x1x1xf32, #tpu.memory_space<vmem>>, %arg7: memref<1x1x32xf32, #tpu.memory_space<vmem>>) attributes {dimension_semantics = [#tpu.dimension_semantics<parallel>, #tpu.dimension_semantics<arbitrary>], iteration_bounds = array<i64: 1, 1>, scalar_prefetch = 0 : i64, scratch_operands = 0 : i64, tpu.core_type = #tpu.core_type<tc>, window_params = [{transform_indices = @transform_0, window_bounds = array<i64: 8, 32>}, {pipeline_mode = #tpu.pipeline_mode<synchronous>, transform_indices = @transform_1, window_bounds = array<i64: 32, 16>}, {pipeline_mode = #tpu.pipeline_mode<synchronous>, transform_indices = @transform_2, window_bounds = array<i64: 1, 16>}, {transform_indices = @transform_3, window_bounds = array<i64: 1, 1, 1>}, {transform_indices = @transform_4, window_bounds = array<i64: 1, 1, 1>}, {transform_indices = @transform_5, window_bounds = array<i64: 1, 1, 32>}]} {
    %c0_i32 = arith.constant 0 : i32
    %0 = arith.cmpi eq, %arg1, %c0_i32 : i32
    %1 = arith.extui %0 : i1 to i32
    %c0_i32_0 = arith.constant 0 : i32
    %2 = arith.cmpi ne, %1, %c0_i32_0 : i32
    scf.if %2 {
      %cst_28 = arith.constant 0xFF800000 : f32
      %46 = vector.broadcast %cst_28 : f32 to vector<1x1x1xf32>
      %c0_29 = arith.constant 0 : index
      %c0_30 = arith.constant 0 : index
      %c0_31 = arith.constant 0 : index
      %47 = vector.load %arg5[%c0_29, %c0_30, %c0_31] : memref<1x1x1xf32, #tpu.memory_space<vmem>>, vector<1x1x1xf32>
      tpu.vector_store %arg5[%c0_29, %c0_30, %c0_31], %46 {strides = array<i32>} : memref<1x1x1xf32, #tpu.memory_space<vmem>>, vector<1x1x1xf32>,
      %cst_32 = arith.constant 0.000000e+00 : f32
      %48 = vector.broadcast %cst_32 : f32 to vector<1x1x1xf32>
      %c0_33 = arith.constant 0 : index
      %c0_34 = arith.constant 0 : index
      %c0_35 = arith.constant 0 : index
      %49 = vector.load %arg6[%c0_33, %c0_34, %c0_35] : memref<1x1x1xf32, #tpu.memory_space<vmem>>, vector<1x1x1xf32>
      tpu.vector_store %arg6[%c0_33, %c0_34, %c0_35], %48 {strides = array<i32>} : memref<1x1x1xf32, #tpu.memory_space<vmem>>, vector<1x1x1xf32>,
      %cst_36 = arith.constant 0.000000e+00 : f32
      %50 = vector.broadcast %cst_36 : f32 to vector<1x1x32xf32>
      %c0_37 = arith.constant 0 : index
      %c0_38 = arith.constant 0 : index
      %c0_39 = arith.constant 0 : index
      %51 = vector.load %arg7[%c0_37, %c0_38, %c0_39] : memref<1x1x32xf32, #tpu.memory_space<vmem>>, vector<1x1x32xf32>
      tpu.vector_store %arg7[%c0_37, %c0_38, %c0_39], %50 {strides = array<i32>} : memref<1x1x32xf32, #tpu.memory_space<vmem>>, vector<1x1x32xf32>,
    } else {
    }
    %c0 = arith.constant 0 : index
    %c0_1 = arith.constant 0 : index
    %3 = vector.load %arg2[%c0, %c0_1] : memref<8x32xf32, #tpu.memory_space<vmem>>, vector<8x32xf32>
    %c0_2 = arith.constant 0 : index
    %c0_3 = arith.constant 0 : index
    %4 = vector.load %arg3[%c0_2, %c0_3] : memref<32x16xf32, #tpu.memory_space<vmem>>, vector<32x16xf32>
    %cst = arith.constant dense<0.000000e+00> : vector<8x16xf32>
    %5 = tpu.matmul %3, %4, %cst {dimension_numbers = #tpu.dot_dimension_numbers<[1], [0], [0], [1], [0, 0, 1, 1], [], []>} : vector<8x32xf32>, vector<32x16xf32>, vector<8x16xf32> -> vector<8x16xf32>
    %6 = math.tanh %5 : vector<8x16xf32>
    %c0_4 = arith.constant 0 : index
    %c0_5 = arith.constant 0 : index
    %7 = vector.load %arg4[%c0_4, %c0_5] : memref<1x16xf32, #tpu.memory_space<vmem>>, vector<1x16xf32>
    %8 = vector.broadcast %7 : vector<1x16xf32> to vector<8x16xf32>
    %9 = arith.mulf %6, %8 : vector<8x16xf32>
    %cst_6 = arith.constant dense<0.000000e+00> : vector<8xf32>
    %10 = vector.multi_reduction <add>, %9, %cst_6 [1] : vector<8x16xf32> to vector<8xf32>
    %11 = vector.shape_cast %10 : vector<8xf32> to vector<8x1xf32>
    %c0_7 = arith.constant 0 : index
    %c0_8 = arith.constant 0 : index
    %c0_9 = arith.constant 0 : index
    %12 = vector.load %arg5[%c0_7, %c0_8, %c0_9] : memref<1x1x1xf32, #tpu.memory_space<vmem>>, vector<1x1x1xf32>
    %13 = vector.shape_cast %12 : vector<1x1x1xf32> to vector<1x1xf32>
    %cst_10 = arith.constant dense<0xFF800000> : vector<1xf32>
    %14 = vector.multi_reduction <maximumf>, %11, %cst_10 [0] : vector<8x1xf32> to vector<1xf32>
    %15 = vector.shape_cast %14 : vector<1xf32> to vector<1x1xf32>
    %16 = arith.maximumf %13, %15 : vector<1x1xf32>
    %17 = arith.subf %13, %16 : vector<1x1xf32>
    %18 = math.exp %17 : vector<1x1xf32>
    %19 = vector.broadcast %16 : vector<1x1xf32> to vector<8x1xf32>
    %20 = arith.subf %11, %19 : vector<8x1xf32>
    %21 = math.exp %20 : vector<8x1xf32>
    %c0_11 = arith.constant 0 : index
    %c0_12 = arith.constant 0 : index
    %c0_13 = arith.constant 0 : index
    %22 = vector.load %arg6[%c0_11, %c0_12, %c0_13] : memref<1x1x1xf32, #tpu.memory_space<vmem>>, vector<1x1x1xf32>
    %23 = vector.shape_cast %22 : vector<1x1x1xf32> to vector<1x1xf32>
    %24 = arith.mulf %18, %23 : vector<1x1xf32>
    %cst_14 = arith.constant dense<0.000000e+00> : vector<1xf32>
    %25 = vector.multi_reduction <add>, %21, %cst_14 [0] : vector<8x1xf32> to vector<1xf32>
    %26 = vector.shape_cast %25 : vector<1xf32> to vector<1x1xf32>
    %27 = arith.addf %24, %26 : vector<1x1xf32>
    %c0_15 = arith.constant 0 : index
    %c0_16 = arith.constant 0 : index
    %c0_17 = arith.constant 0 : index
    %28 = vector.load %arg6[%c0_15, %c0_16, %c0_17] : memref<1x1x1xf32, #tpu.memory_space<vmem>>, vector<1x1x1xf32>
    %29 = vector.shape_cast %28 : vector<1x1x1xf32> to vector<1x1xf32>
    %30 = vector.shape_cast %27 : vector<1x1xf32> to vector<1x1x1xf32>
    tpu.vector_store %arg6[%c0_15, %c0_16, %c0_17], %30 {strides = array<i32>} : memref<1x1x1xf32, #tpu.memory_space<vmem>>, vector<1x1x1xf32>,
    %31 = vector.broadcast %21 : vector<8x1xf32> to vector<8x32xf32>
    %32 = arith.mulf %31, %3 : vector<8x32xf32>
    %c0_18 = arith.constant 0 : index
    %c0_19 = arith.constant 0 : index
    %c0_20 = arith.constant 0 : index
    %33 = vector.load %arg7[%c0_18, %c0_19, %c0_20] : memref<1x1x32xf32, #tpu.memory_space<vmem>>, vector<1x1x32xf32>
    %34 = vector.shape_cast %33 : vector<1x1x32xf32> to vector<1x32xf32>
    %35 = vector.broadcast %18 : vector<1x1xf32> to vector<1x32xf32>
    %36 = arith.mulf %35, %34 : vector<1x32xf32>
    %cst_21 = arith.constant dense<0.000000e+00> : vector<32xf32>
    %37 = vector.multi_reduction <add>, %32, %cst_21 [0] : vector<8x32xf32> to vector<32xf32>
    %38 = vector.shape_cast %37 : vector<32xf32> to vector<1x32xf32>
    %39 = arith.addf %36, %38 : vector<1x32xf32>
    %c0_22 = arith.constant 0 : index
    %c0_23 = arith.constant 0 : index
    %c0_24 = arith.constant 0 : index
    %40 = vector.load %arg7[%c0_22, %c0_23, %c0_24] : memref<1x1x32xf32, #tpu.memory_space<vmem>>, vector<1x1x32xf32>
    %41 = vector.shape_cast %40 : vector<1x1x32xf32> to vector<1x32xf32>
    %42 = vector.shape_cast %39 : vector<1x32xf32> to vector<1x1x32xf32>
    tpu.vector_store %arg7[%c0_22, %c0_23, %c0_24], %42 {strides = array<i32>} : memref<1x1x32xf32, #tpu.memory_space<vmem>>, vector<1x1x32xf32>,
    %c0_25 = arith.constant 0 : index
    %c0_26 = arith.constant 0 : index
    %c0_27 = arith.constant 0 : index
    %43 = vector.load %arg5[%c0_25, %c0_26, %c0_27] : memref<1x1x1xf32, #tpu.memory_space<vmem>>, vector<1x1x1xf32>
    %44 = vector.shape_cast %43 : vector<1x1x1xf32> to vector<1x1xf32>
    %45 = vector.shape_cast %16 : vector<1x1xf32> to vector<1x1x1xf32>
    tpu.vector_store %arg5[%c0_25, %c0_26, %c0_27], %45 {strides = array<i32>} : memref<1x1x1xf32, #tpu.memory_space<vmem>>, vector<1x1x1xf32>,
    return
  }
  func.func @transform_0(%arg0: i32, %arg1: i32) -> (i32, i32) {
    %c1_i32 = arith.constant 1 : i32
    %0 = arith.muli %arg0, %c1_i32 : i32
    %1 = arith.addi %0, %arg1 : i32
    %c0_i32 = arith.constant 0 : i32
    %c0_i32_0 = arith.constant 0 : i32
    return %1, %c0_i32 : i32, i32
  }
  func.func @transform_1(%arg0: i32, %arg1: i32) -> (i32, i32) {
    %c0_i32 = arith.constant 0 : i32
    %c0_i32_0 = arith.constant 0 : i32
    %c0_i32_1 = arith.constant 0 : i32
    return %c0_i32, %c0_i32_0 : i32, i32
  }
  func.func @transform_2(%arg0: i32, %arg1: i32) -> (i32, i32) {
    %c0_i32 = arith.constant 0 : i32
    %c0_i32_0 = arith.constant 0 : i32
    %c0_i32_1 = arith.constant 0 : i32
    return %c0_i32, %c0_i32_0 : i32, i32
  }
  func.func @transform_3(%arg0: i32, %arg1: i32) -> (i32, i32, i32) {
    %c0_i32 = arith.constant 0 : i32
    %c0_i32_0 = arith.constant 0 : i32
    %c0_i32_1 = arith.constant 0 : i32
    return %arg0, %c0_i32, %c0_i32_0 : i32, i32, i32
  }
  func.func @transform_4(%arg0: i32, %arg1: i32) -> (i32, i32, i32) {
    %c0_i32 = arith.constant 0 : i32
    %c0_i32_0 = arith.constant 0 : i32
    %c0_i32_1 = arith.constant 0 : i32
    return %arg0, %c0_i32, %c0_i32_0 : i32, i32, i32
  }
  func.func @transform_5(%arg0: i32, %arg1: i32) -> (i32, i32, i32) {
    %c0_i32 = arith.constant 0 : i32
    %c0_i32_0 = arith.constant 0 : i32
    %c0_i32_1 = arith.constant 0 : i32
    return %arg0, %c0_i32, %c0_i32_0 : i32, i32, i32
  }
}

</mosaic_0001>

<llo_original>
// kernel: tpu_custom_call.1
$region0: #{tpu_custom_call.1}
  #allocation0 [shape = 'u32[]', space=smem, size = 0x4, offset = 0x4, fixed_abs, tag = 'smem constant byte address 0x4 - core index']
  #allocation1 [shape = 'u32[144,128]{1,0:T(1,128)}', space=vmem, size = 0x12000, scoped, tag = 'internal scratch']
  %s0 = inlined_call_operand.vmem [shape: f32[8,32], index: 0, kind: input, shape index: {}]
  %s1 = inlined_call_operand.vmem [shape: f32[32,16], index: 1, kind: input, shape index: {}]
  %s2 = inlined_call_operand.vmem [shape: f32[1,16], index: 2, kind: input, shape index: {}]
  %s3 = inlined_call_operand.hbm [shape: f32[1,1,1], index: 3, kind: output, shape index: {0}]
  %s4 = inlined_call_operand.hbm [shape: f32[1,1,1], index: 4, kind: output, shape index: {1}]
  %s5 = inlined_call_operand.hbm [shape: f32[1,1,32], index: 5, kind: output, shape index: {2}]
  %6 = xla_tuple %s3, %s4, %s5
  %s7 = sld [smem:[#allocation0]]
  $region42: #{tpu_custom_call.1} parent=0
    _
  %s9 = ssub.s32 1, %s7
  %s10 = scalar_select 0, %s9, %s7
  $region1: #{tpu_custom_call.1} parent=0
    #allocation2 [shape = 'u8[512]{0}', space=vmem, size = 0x400, scoped, tag = 'output window, operand 0, single buffered']
    #allocation3 [shape = 's32[1]{0}', space=sflag, size = 0x4, scoped, tag = 'scoped memory for tpu_custom_call.1']
    #allocation4 [shape = 'u8[512]{0}', space=vmem, size = 0x400, scoped, tag = 'output window, operand 1, single buffered']
    #allocation5 [shape = 's32[1]{0}', space=sflag, size = 0x4, scoped, tag = 'scoped memory for tpu_custom_call.1']
    #allocation6 [shape = 'u8[512]{0}', space=vmem, size = 0x400, scoped, tag = 'output window, operand 2, single buffered']
    %11 = vsyncpa [#allocation3], 0
    %12 = vsyncpa [#allocation5], 0
    // Predicated region
    $region2: #{tpu_custom_call.1} parent=1 // pred_check
      _
    $region3: #{tpu_custom_call.1} parent=1 // pred_check_branch
      %14 = sbr.rel (0) target = $region5
    $region4: #{tpu_custom_call.1} parent=1 // pred_region
      %s15 = sadd.s32 0, 0
      %p16 = scmp.lt.s32.totalorder %s15, 0
      %s17 = scalar_select %p16, %s15, 0
      %s18 = smul.addr %s17, 8
      %s19 = scalar_lea.vmem %s0, %s18
      %s20 = sadd.s32 0, 0
    $region5: #{tpu_custom_call.1} parent=1 // pred_fallthru
      _
    // Predicated region
    $region6: #{tpu_custom_call.1} parent=1 // pred_check
      _
    $region7: #{tpu_custom_call.1} parent=1 // pred_check_branch
      %22 = sbr.rel (0) target = $region9
    $region8: #{tpu_custom_call.1} parent=1 // pred_region
      _
    $region9: #{tpu_custom_call.1} parent=1 // pred_fallthru
      _
    // Predicated region
    $region10: #{tpu_custom_call.1} parent=1 // pred_check
      _
    $region11: #{tpu_custom_call.1} parent=1 // pred_check_branch
      %24 = sbr.rel (0) target = $region13
    $region12: #{tpu_custom_call.1} parent=1 // pred_region
      _
    $region13: #{tpu_custom_call.1} parent=1 // pred_fallthru
      _
    %s25 = sadd.s32 0, 0
    %p26 = scmp.lt.s32.totalorder %s25, 0
    %s27 = scalar_select %p26, %s25, 0
    %s28 = smul.addr %s27, 8
    %s29 = scalar_lea.vmem %s0, %s28
    %s30 = sadd.s32 0, 0
    %p31 = scmp.lt.s32.totalorder %s30, 0
    %s32 = scalar_select %p31, %s30, 0
    %s33 = smul.addr %s32, 8
    %s34 = scalar_lea.vmem %s0, %s33
    %s35 = sadd.s32 0, 0
    %p36 = scmp.eq.s32.totalorder 0, 0
    // Predicated region
    $region14: #{tpu_custom_call.1} parent=1 // pred_check
      %p37 = pneg %p36
    $region15: #{tpu_custom_call.1} parent=1 // pred_check_branch
      %39 = sbr.rel (%p37) target = $region17
    $region16: #{tpu_custom_call.1} parent=1 // pred_region
      %vm40 = vcmask 0
      %41 = vst.msk [vmem:[#allocation2] sm:$0x1] %vm40, -inf
      %42 = vst.msk [vmem:[#allocation4] sm:$0x1] %vm40, 0.0
      %vm43 = vcmask 253952
      %44 = vst.msk [vmem:[#allocation6] sm:$0x1] %vm43, 0.0
    $region17: #{tpu_custom_call.1} parent=1 // pred_fallthru
      _
    %v45 = vld [vmem:[%s34] sm:$0xff]
    %v46 = vld [vmem:[%s1] sm:$0xff]
    %v47 = vld [vmem:[%s1 + $0x8] sm:$0xff]
    %v48 = vld [vmem:[%s1 + $0x10] sm:$0xff]
    %v49 = vld [vmem:[%s1 + $0x18] sm:$0xff]
    %vm50 = vcmask 261120
    %v52 = vsel %vm50, %v45, 0
    %54 = vmatprep.subr.mxu0 0.0
    %55 = vmatpush1.msra.mxu0 %v46
    %56 = vmatprep.subr.mxu0 0.0
    %57 = vmatpush1.msra.mxu0 %v47
    %58 = vmatprep.subr.mxu0 0.0
    %59 = vmatpush1.msra.mxu0 %v48
    %60 = vmatprep.subr.mxu0 0.0
    %61 = vmatpush1.msra.mxu0 %v49
    %62 = vmatprep.subr.mxu0 0.0
    %63 = vmatpush1.msra.mxu0 0.0
    %64 = vmatprep.subr.mxu0 0.0
    %65 = vmatpush1.msra.mxu0 0.0
    %66 = vmatprep.subr.mxu0 0.0
    %67 = vmatpush1.msra.mxu0 0.0
    %68 = vmatprep.subr.mxu0 0.0
    %69 = vmatpush1.msra.mxu0 0.0
    %70 = vmatprep.subr.mxu0 0.0
    %71 = vmatpush1.msra.mxu0 0.0
    %72 = vmatprep.subr.mxu0 0.0
    %73 = vmatpush1.msra.mxu0 0.0
    %74 = vmatprep.subr.mxu0 0.0
    %75 = vmatpush1.msra.mxu0 0.0
    %76 = vmatprep.subr.mxu0 0.0
    %77 = vmatpush1.msra.mxu0 0.0
    %78 = vmatprep.subr.mxu0 0.0
    %79 = vmatpush1.msra.mxu0 0.0
    %80 = vmatprep.subr.mxu0 0.0
    %81 = vmatpush1.msra.mxu0 0.0
    %82 = vmatprep.subr.mxu0 0.0
    %83 = vmatpush1.msra.mxu0 0.0
    %84 = vmatprep.subr.mxu0 0.0
    %85 = vmatpush1.msra.mxu0 0.0
    %86 = vmatprep.subr.mxu0 0.0
    %87 = vmatpush1.msra.mxu0 0.0
    %88 = vmatprep.subr.mxu0 0.0
    %89 = vmatpush1.msra.mxu0 0.0
    %90 = vmatprep.subr.mxu0 0.0
    %91 = vmatpush1.msra.mxu0 0.0
    %92 = vmatprep.subr.mxu0 0.0
    %93 = vmatpush1.msra.mxu0 0.0
    %94 = vmatprep.subr.mxu0 0.0
    %95 = vmatpush1.msra.mxu0 0.0
    %96 = vmatprep.subr.mxu0 0.0
    %97 = vmatpush1.msra.mxu0 0.0
    %98 = vmatprep.subr.mxu0 0.0
    %99 = vmatpush1.msra.mxu0 0.0
    %100 = vmatprep.subr.mxu0 0.0
    %101 = vmatpush1.msra.mxu0 0.0
    %102 = vmatprep.subr.mxu0 0.0
    %103 = vmatpush1.msra.mxu0 0.0
    %104 = vmatprep.subr.mxu0 0.0
    %105 = vmatpush1.msra.mxu0 0.0
    %106 = vmatprep.subr.mxu0 0.0
    %107 = vmatpush1.msra.mxu0 0.0
    %108 = vmatprep.subr.mxu0 0.0
    %109 = vmatpush1.msra.mxu0 0.0
    %110 = vmatprep.subr.mxu0 0.0
    %111 = vmatpush1.msra.mxu0 0.0
    %112 = vmatprep.subr.mxu0 0.0
    %113 = vmatpush1.msra.mxu0 0.0
    %114 = vmatprep.subr.mxu0 0.0
    %115 = vmatpush1.msra.mxu0 0.0
    %116 = vmatprep.subr.mxu0 0.0
    %117 = vmatpush1.msra.mxu0 0.0
    %118 = vmatprep.mubr.f32.mxu0 0.0
    %119 = vmatmul.mubr.f32.gmra.mrb[0].mxu0 %v52
    %v120 = vpop.f32.mrb[0].mxu0
    %v121 = vadd.f32 0.0, %v120
    %v122 = vpop.f32.mrb[0].mxu0
    %123 = vdwg.mxu0
    %v124 = vtanh.pop %v121
    %v125 = vld [vmem:[%s2] sm:$0x1]
    %v127 = vlaneseq
    %v128 = vshrl.u32 %v127, 7
    %v129 = vsub.s32 0, %v128
    %v130 = vrot.slane %v125, %v129
    %v132 = vmul.f32 %v124, %v130
    %vm133 = vcmask 130048
    %v134 = vsel %vm133, %v132, 0.0
    %135 = vadd.xlane.f32.xlu0 %v134
    %v136 = vpop.xlane.xlu0 %135
    %v137 = vld [vmem:[#allocation2] sm:$0x1]
    %v138 = vrot.slane %v136, 4
    %v139 = vmax.f32 %v136, %v138
    %v140 = vrot.slane %v139, 2
    %v141 = vmax.f32 %v139, %v140
    %v142 = vrot.slane %v141, 1
    %v143 = vmax.f32 %v141, %v142
    %v144 = vmax.f32 %v137, %v143
    %v145 = vsub.f32 %v137, %v144
    %v146 = vmul.f32 %v145, 1.442695
    %v147 = vpow.pop %v146
    %v149 = vlaneseq
    %v150 = vshrl.u32 %v149, 7
    %v151 = vsub.s32 0, %v150
    %v152 = vrot.slane %v144, %v151
    %v154 = vsub.f32 %v136, %v152
    %v155 = vmul.f32 %v154, 1.442695
    %v156 = vpow.pop %v155
    %v157 = vld [vmem:[#allocation4] sm:$0x1]
    %v158 = vmul.f32 %v147, %v157
    %vm159 = vcmask 7168
    %v160 = vsel %vm159, %v156, 0.0
    %v161 = vrot.slane %v160, 4
    %v162 = vadd.f32 %v160, %v161
    %v163 = vrot.slane %v162, 2
    %v164 = vadd.f32 %v162, %v163
    %v165 = vrot.slane %v164, 1
    %v166 = vadd.f32 %v164, %v165
    %v167 = vadd.f32 %v158, %v166
    %vm168 = vcmask 0
    %169 = vst.msk [vmem:[#allocation4] sm:$0x1] %vm168, %v167
    %171 = vset.pattern.permute.xlu0 0
    %172 = vperm.xlu0 %171, %v156
    %v173 = vpop.permute.xlu0 %172
    %v175 = vmul.f32 %v173, %v45
    %v176 = vld [vmem:[#allocation6] sm:$0x1]
    %178 = vset.pattern.permute.xlu0 0
    %179 = vperm.xlu0 %178, %v147
    %v180 = vpop.permute.xlu0 %179
    %v182 = vlaneseq
    %v183 = vshrl.u32 %v182, 7
    %v184 = vsub.s32 0, %v183
    %v185 = vrot.slane %v180, %v184
    %v186 = vmul.f32 %v185, %v176
    %v187 = vsel %vm50, %v175, 0.0
    %v188 = vrot.slane %v187, 4
    %v189 = vadd.f32 %v187, %v188
    %v190 = vrot.slane %v189, 2
    %v191 = vadd.f32 %v189, %v190
    %v192 = vrot.slane %v191, 1
    %v193 = vadd.f32 %v191, %v192
    %v194 = vadd.f32 %v186, %v193
    %vm195 = vcmask 253952
    %196 = vst.msk [vmem:[#allocation6] sm:$0x1] %vm195, %v194
    %197 = vst.msk [vmem:[#allocation2] sm:$0x1] %vm168, %v144
    // Predicated region
    $region18: #{tpu_custom_call.1} parent=1 // pred_check
      _
    $region19: #{tpu_custom_call.1} parent=1 // pred_check_branch
      %199 = sbr.rel (0) target = $region21
    $region20: #{tpu_custom_call.1} parent=1 // pred_region
      %s201 = ssub.s32 16, 16
      %202 = vsyncadd [#allocation3], %s201
      %s204 = sshll.u32 [#allocation2], 4
      %s205 = int_to_ptr.vmem [resolvable:$true] %s204
      %207 = dma.vmem_to_hbm [thread:$0]  %s205, 16, %s3, [#allocation3]
    $region21: #{tpu_custom_call.1} parent=1 // pred_fallthru
      _
    // Predicated region
    $region22: #{tpu_custom_call.1} parent=1 // pred_check
      _
    $region23: #{tpu_custom_call.1} parent=1 // pred_check_branch
      %209 = sbr.rel (0) target = $region25
    $region24: #{tpu_custom_call.1} parent=1 // pred_region
      %s211 = ssub.s32 16, 16
      %212 = vsyncadd [#allocation5], %s211
      %s214 = sshll.u32 [#allocation4], 4
      %s215 = int_to_ptr.vmem [resolvable:$true] %s214
      %217 = dma.vmem_to_hbm [thread:$0]  %s215, 16, %s4, [#allocation5]
    $region25: #{tpu_custom_call.1} parent=1 // pred_fallthru
      _
    // Predicated region
    $region26: #{tpu_custom_call.1} parent=1 // pred_check
      _
    $region27: #{tpu_custom_call.1} parent=1 // pred_check_branch
      %219 = sbr.rel (0) target = $region29
    $region28: #{tpu_custom_call.1} parent=1 // pred_region
      %s221 = ssub.s32 16, 16
      %222 = vsyncadd [#allocation5], %s221
      %s224 = sshll.u32 [#allocation6], 4
      %s225 = int_to_ptr.vmem [resolvable:$true] %s224
      %227 = dma.vmem_to_hbm [thread:$0]  %s225, 16, %s5, [#allocation5]
    $region29: #{tpu_custom_call.1} parent=1 // pred_fallthru
      _
    // Predicated region
    $region30: #{tpu_custom_call.1} parent=1 // pred_check
      _
    $region31: #{tpu_custom_call.1} parent=1 // pred_check_branch
      %229 = sbr.rel (0) target = $region33
    $region32: #{tpu_custom_call.1} parent=1 // pred_region
      %230 = dma.done [#allocation3], 16
    $region33: #{tpu_custom_call.1} parent=1 // pred_fallthru
      _
    // Predicated region
    $region34: #{tpu_custom_call.1} parent=1 // pred_check
      _
    $region35: #{tpu_custom_call.1} parent=1 // pred_check_branch
      %232 = sbr.rel (0) target = $region37
    $region36: #{tpu_custom_call.1} parent=1 // pred_region
      %233 = dma.done [#allocation5], 16
    $region37: #{tpu_custom_call.1} parent=1 // pred_fallthru
      _
    // Predicated region
    $region38: #{tpu_custom_call.1} parent=1 // pred_check
      _
    $region39: #{tpu_custom_call.1} parent=1 // pred_check_branch
      %235 = sbr.rel (0) target = $region41
    $region40: #{tpu_custom_call.1} parent=1 // pred_region
      %236 = dma.done [#allocation5], 16
    $region41: #{tpu_custom_call.1} parent=1 // pred_fallthru
      _
    %237 = vsyncpa [#allocation3], 1
    %238 = vsyncpa [#allocation5], 1

</llo_original>
